<compile_context>
chip_gen: v7x
topology: tpu7x:2x2x1
jax: 0.10.0
libtpu: 0.0.40
codegen_flags: <defaults>
</compile_context>

<pallas_src>
import functools

import jax
import jax.numpy as jnp
from jax.experimental import pallas as pl
from jax.experimental.pallas import tpu as pltpu


def _attention_pooling_kernel(
    x_ref,        # (B, D)            input features
    wcat_ref,     # (D, V*H + Hv)     fused [expert layer-1 | voting layer-1] weights
    bcat_ref,     # (1, V*H + Hv)     fused biases
    wv2_ref,      # (Hv, V)           voting Linear 2 weight
    bv2_ref,      # (1, V)            voting Linear 2 bias
    w2bd_ref,     # (V*H, V*H)        block-diagonal expert layer-2 weights
    b2cat_ref,    # (1, V*H)          expert layer-2 biases, concat
    expand_ref,   # (V, V*H)          one-hot expansion: votes -> per-lane vote weights
    w3stk_ref,    # (V*H, O)          stacked expert layer-3 weights
    b3stk_ref,    # (V, O)            stacked expert layer-3 biases
    out_ref,      # (B, O)            output
    *, vh,        # static: V*H
):
    x = x_ref[...]

    # --- fused layer 1: all V experts' first Linear + voting first Linear,
    #     one lane-dense (D, V*H + Hv) matmul; both paths share the ReLU. ---
    h_all = jnp.dot(x, wcat_ref[...], preferred_element_type=jnp.float32)
    h_all = jnp.maximum(h_all + bcat_ref[...], 0.0)
    h1_all = h_all[:, :vh]       # (B, V*H)  lane-group-aligned static slice
    hv = h_all[:, vh:]           # (B, Hv)   starts on a lane-group boundary

    # --- voting network: Linear -> softmax(dim=1) ---
    logits = jnp.dot(hv, wv2_ref[...], preferred_element_type=jnp.float32)
    logits = logits + bv2_ref[...]
    m = jnp.max(logits, axis=1, keepdims=True)
    e = jnp.exp(logits - m)
    # exact reciprocal: keeps the 1e-5 match with the reference softmax
    votes = e * pl.reciprocal(jnp.sum(e, axis=1, keepdims=True))      # (B, V)

    # --- expert layer 2: single block-diagonal 128-wide matmul ---
    h2_all = jnp.dot(h1_all, w2bd_ref[...], preferred_element_type=jnp.float32)
    h2_all = jnp.maximum(h2_all + b2cat_ref[...], 0.0)                # (B, V*H)

    # --- fold votes into h2 (vote_bcast via one MXU pass, exact: one-hot) ---
    vote_bcast = jnp.dot(votes, expand_ref[...],
                         preferred_element_type=jnp.float32)          # (B, V*H)
    h2w = h2_all * vote_bcast

    # --- layer 3 + sum over experts rides the MXU contraction; bias term is
    #     carried as votes @ B3_stack so semantics match the reference. ---
    out = jnp.dot(h2w, w3stk_ref[...], preferred_element_type=jnp.float32)
    out = out + jnp.dot(votes, b3stk_ref[...], preferred_element_type=jnp.float32)

    # TODO(synk): if O/B grow, accumulate into a lane-dense (B, 128-multiple)
    # slab and slice in the wrapper to avoid masked vst.msk partial stores.
    out_ref[...] = out.astype(out_ref.dtype)


def _block_diag(blocks):
    """blocks: (V, H, H) -> (V*H, V*H) block-diagonal (one-time prep)."""
    V, H, _ = blocks.shape
    out = jnp.zeros((V * H, V * H), blocks.dtype)
    for v in range(V):
        out = out.at[v * H:(v + 1) * H, v * H:(v + 1) * H].set(blocks[v])
    return out


def prepare_params(params):
    """One-time weight plumbing, hoisted out of the per-call inference path."""
    V, D, H = params["w1"].shape
    Hv = params["wv1"].shape[1]
    O = params["w3"].shape[-1]

    # expert layer-1 weights concatenated on the output dim, then the voting
    # layer-1 weights appended (expert block first -> both slices lane-aligned)
    w1cat = jnp.transpose(params["w1"], (1, 0, 2)).reshape(D, V * H)     # (D, V*H)
    b1cat = params["b1"].reshape(1, V * H)                               # (1, V*H)
    wcat = jnp.concatenate([w1cat, params["wv1"]], axis=1)               # (D, V*H+Hv)
    bcat = jnp.concatenate([b1cat, params["bv1"]], axis=1)               # (1, V*H+Hv)

    w2bd = _block_diag(params["w2"])                                     # (V*H, V*H)
    b2cat = params["b2"].reshape(1, V * H)                               # (1, V*H)

    # one-hot expansion matrix: votes (B,V) @ expand (V,V*H) -> (B,V*H), exact
    expand = jnp.kron(jnp.eye(V, dtype=jnp.float32),
                      jnp.ones((1, H), jnp.float32))                     # (V, V*H)

    w3stk = params["w3"].reshape(V * H, O)                               # (V*H, O)
    b3stk = params["b3"].reshape(V, O)                                   # (V, O)

    return {
        "wcat": wcat, "bcat": bcat,
        "wv2": params["wv2"], "bv2": params["bv2"],
        "w2bd": w2bd, "b2cat": b2cat, "expand": expand,
        "w3stk": w3stk, "b3stk": b3stk,
        "dims": (V, H, Hv, D, O),
    }


def attention_pooling(x, prepped):
    """x: (B, input_size) float32.  prepped: output of prepare_params()."""
    B, _ = x.shape
    V, H, Hv, D, O = prepped["dims"]
    vh = V * H

    kernel = functools.partial(_attention_pooling_kernel, vh=vh)

    # TODO(synk): for large production batches, add a batch-tiled grid axis
    # marked dimension_semantics=("parallel",) so it shards across v7x's two
    # TensorCores, and set vmem_limit_bytes for v7x's tighter 64 MiB VMEM;
    # unnecessary at these tiny shapes.
    vmem = pl.BlockSpec(memory_space=pltpu.MemorySpace.VMEM)

    return pl.pallas_call(
        kernel,
        out_shape=jax.ShapeDtypeStruct((B, O), x.dtype),
        in_specs=[vmem] * 10,
        out_specs=vmem,
    )(
        x,
        prepped["wcat"], prepped["bcat"],
        prepped["wv2"], prepped["bv2"],
        prepped["w2bd"], prepped["b2cat"], prepped["expand"],
        prepped["w3stk"], prepped["b3stk"],
    )


def init_params(key, num_output, num_votes, input_size, hidden_size):
    ks = jax.random.split(key, 12)
    s = 0.1
    return {
        # voting network
        "wv1": s * jax.random.normal(ks[0], (input_size, hidden_size), jnp.float32),
        "bv1": s * jax.random.normal(ks[1], (1, hidden_size), jnp.float32),
        "wv2": s * jax.random.normal(ks[2], (hidden_size, num_votes), jnp.float32),
        "bv2": s * jax.random.normal(ks[3], (1, num_votes), jnp.float32),
        # stacked expert networks (leading axis = vote index)
        "w1": s * jax.random.normal(ks[4], (num_votes, input_size, hidden_size), jnp.float32),
        "b1": s * jax.random.normal(ks[5], (num_votes, 1, hidden_size), jnp.float32),
        "w2": s * jax.random.normal(ks[6], (num_votes, hidden_size, hidden_size), jnp.float32),
        "b2": s * jax.random.normal(ks[7], (num_votes, 1, hidden_size), jnp.float32),
        "w3": s * jax.random.normal(ks[8], (num_votes, hidden_size, num_output), jnp.float32),
        "b3": s * jax.random.normal(ks[9], (num_votes, 1, num_output), jnp.float32),
    }


def reference_forward(x, p):
    """Pure-JAX mirror of the PyTorch forward (dropout = identity)."""
    V = p["w1"].shape[0]
    outs = []
    for v in range(V):
        h1 = jax.nn.relu(x @ p["w1"][v] + p["b1"][v, 0])
        h2 = jax.nn.relu(h1 @ p["w2"][v] + p["b2"][v, 0])
        outs.append((h2 @ p["w3"][v] + p["b3"][v, 0])[..., None])
    all_outputs = jnp.concatenate(outs, axis=-1)                # (B, O, V)
    h = jax.nn.relu(x @ p["wv1"] + p["bv1"])
    votes = jax.nn.softmax(h @ p["wv2"] + p["bv2"], axis=1)     # (B, V)
    return jnp.sum(all_outputs * votes[:, None, :], axis=-1)    # (B, O)


if __name__ == "__main__":
    # Small shapes consistent with the module's forward: x is (batch, input_size).
    # V*H = 128 -> the fused expert stack is exactly one lane group wide.
    num_output, num_votes, input_size, hidden_size = 8, 4, 32, 32
    batch = 8

    key = jax.random.PRNGKey(0)
    kx, kp = jax.random.split(key)
    x = jax.random.normal(kx, (batch, input_size), jnp.float32)
    params = init_params(kp, num_output, num_votes, input_size, hidden_size)

    # one-time parameter preparation (load time, not per inference call)
    prepped = prepare_params(params)
    prepped = jax.tree_util.tree_map(
        lambda a: jax.block_until_ready(a) if isinstance(a, jax.Array) else a, prepped)

    out = attention_pooling(x, prepped)
    out = jax.block_until_ready(out)

    ref = reference_forward(x, params)
    assert out.shape == (batch, num_output)
    assert jnp.allclose(out, ref, atol=1e-5, rtol=1e-5), (out, ref)

    print("KERNEL_OK")
</pallas_src>

<mosaic_0001>
module attributes {stable_mosaic.version = 11 : i64} {
  func.func @_attention_pooling_kernel(%arg0: memref<8x32xf32, #tpu.memory_space<vmem>>, %arg1: memref<32x160xf32, #tpu.memory_space<vmem>>, %arg2: memref<1x160xf32, #tpu.memory_space<vmem>>, %arg3: memref<32x4xf32, #tpu.memory_space<vmem>>, %arg4: memref<1x4xf32, #tpu.memory_space<vmem>>, %arg5: memref<128x128xf32, #tpu.memory_space<vmem>>, %arg6: memref<1x128xf32, #tpu.memory_space<vmem>>, %arg7: memref<4x128xf32, #tpu.memory_space<vmem>>, %arg8: memref<128x8xf32, #tpu.memory_space<vmem>>, %arg9: memref<4x8xf32, #tpu.memory_space<vmem>>, %arg10: memref<8x8xf32, #tpu.memory_space<vmem>>) attributes {dimension_semantics = [], scalar_prefetch = 0 : i64, scratch_operands = 0 : i64, tpu.core_type = #tpu.core_type<tc>} {
    %c0 = arith.constant 0 : index
    %c0_0 = arith.constant 0 : index
    %0 = vector.load %arg0[%c0, %c0_0] : memref<8x32xf32, #tpu.memory_space<vmem>>, vector<8x32xf32>
    %c0_1 = arith.constant 0 : index
    %c0_2 = arith.constant 0 : index
    %1 = vector.load %arg1[%c0_1, %c0_2] : memref<32x160xf32, #tpu.memory_space<vmem>>, vector<32x160xf32>
    %cst = arith.constant dense<0.000000e+00> : vector<8x160xf32>
    %2 = tpu.matmul %0, %1, %cst {dimension_numbers = #tpu.dot_dimension_numbers<[1], [0], [0], [1], [0, 0, 1, 1], [], []>} : vector<8x32xf32>, vector<32x160xf32>, vector<8x160xf32> -> vector<8x160xf32>
    %c0_3 = arith.constant 0 : index
    %c0_4 = arith.constant 0 : index
    %3 = vector.load %arg2[%c0_3, %c0_4] : memref<1x160xf32, #tpu.memory_space<vmem>>, vector<1x160xf32>
    %4 = vector.broadcast %3 : vector<1x160xf32> to vector<8x160xf32>
    %5 = arith.addf %2, %4 : vector<8x160xf32>
    %cst_5 = arith.constant 0.000000e+00 : f32
    %6 = vector.broadcast %cst_5 : f32 to vector<8x160xf32>
    %7 = arith.maximumf %5, %6 : vector<8x160xf32>
    %8 = vector.extract_strided_slice %7 {offsets = [0, 0], sizes = [8, 128], strides = [1, 1]} : vector<8x160xf32> to vector<8x128xf32>
    %9 = vector.extract_strided_slice %7 {offsets = [0, 128], sizes = [8, 32], strides = [1, 1]} : vector<8x160xf32> to vector<8x32xf32>
    %c0_6 = arith.constant 0 : index
    %c0_7 = arith.constant 0 : index
    %10 = vector.load %arg3[%c0_6, %c0_7] : memref<32x4xf32, #tpu.memory_space<vmem>>, vector<32x4xf32>
    %cst_8 = arith.constant dense<0.000000e+00> : vector<8x4xf32>
    %11 = tpu.matmul %9, %10, %cst_8 {dimension_numbers = #tpu.dot_dimension_numbers<[1], [0], [0], [1], [0, 0, 1, 1], [], []>} : vector<8x32xf32>, vector<32x4xf32>, vector<8x4xf32> -> vector<8x4xf32>
    %c0_9 = arith.constant 0 : index
    %c0_10 = arith.constant 0 : index
    %12 = vector.load %arg4[%c0_9, %c0_10] : memref<1x4xf32, #tpu.memory_space<vmem>>, vector<1x4xf32>
    %13 = vector.broadcast %12 : vector<1x4xf32> to vector<8x4xf32>
    %14 = arith.addf %11, %13 : vector<8x4xf32>
    %cst_11 = arith.constant dense<0xFF800000> : vector<8xf32>
    %15 = vector.multi_reduction <maximumf>, %14, %cst_11 [1] : vector<8x4xf32> to vector<8xf32>
    %16 = vector.shape_cast %15 : vector<8xf32> to vector<8x1xf32>
    %17 = vector.broadcast %16 : vector<8x1xf32> to vector<8x4xf32>
    %18 = arith.subf %14, %17 : vector<8x4xf32>
    %19 = math.exp %18 : vector<8x4xf32>
    %cst_12 = arith.constant dense<0.000000e+00> : vector<8xf32>
    %20 = vector.multi_reduction <add>, %19, %cst_12 [1] : vector<8x4xf32> to vector<8xf32>
    %21 = vector.shape_cast %20 : vector<8xf32> to vector<8x1xf32>
    %22 = tpu.reciprocal %21 : vector<8x1xf32> -> vector<8x1xf32>
    %23 = vector.broadcast %22 : vector<8x1xf32> to vector<8x4xf32>
    %24 = arith.mulf %19, %23 : vector<8x4xf32>
    %c0_13 = arith.constant 0 : index
    %c0_14 = arith.constant 0 : index
    %25 = vector.load %arg5[%c0_13, %c0_14] : memref<128x128xf32, #tpu.memory_space<vmem>>, vector<128x128xf32>
    %cst_15 = arith.constant dense<0.000000e+00> : vector<8x128xf32>
    %26 = tpu.matmul %8, %25, %cst_15 {dimension_numbers = #tpu.dot_dimension_numbers<[1], [0], [0], [1], [0, 0, 1, 1], [], []>} : vector<8x128xf32>, vector<128x128xf32>, vector<8x128xf32> -> vector<8x128xf32>
    %c0_16 = arith.constant 0 : index
    %c0_17 = arith.constant 0 : index
    %27 = vector.load %arg6[%c0_16, %c0_17] : memref<1x128xf32, #tpu.memory_space<vmem>>, vector<1x128xf32>
    %28 = vector.broadcast %27 : vector<1x128xf32> to vector<8x128xf32>
    %29 = arith.addf %26, %28 : vector<8x128xf32>
    %cst_18 = arith.constant 0.000000e+00 : f32
    %30 = vector.broadcast %cst_18 : f32 to vector<8x128xf32>
    %31 = arith.maximumf %29, %30 : vector<8x128xf32>
    %c0_19 = arith.constant 0 : index
    %c0_20 = arith.constant 0 : index
    %32 = vector.load %arg7[%c0_19, %c0_20] : memref<4x128xf32, #tpu.memory_space<vmem>>, vector<4x128xf32>
    %cst_21 = arith.constant dense<0.000000e+00> : vector<8x128xf32>
    %33 = tpu.matmul %24, %32, %cst_21 {dimension_numbers = #tpu.dot_dimension_numbers<[1], [0], [0], [1], [0, 0, 1, 1], [], []>} : vector<8x4xf32>, vector<4x128xf32>, vector<8x128xf32> -> vector<8x128xf32>
    %34 = arith.mulf %31, %33 : vector<8x128xf32>
    %c0_22 = arith.constant 0 : index
    %c0_23 = arith.constant 0 : index
    %35 = vector.load %arg8[%c0_22, %c0_23] : memref<128x8xf32, #tpu.memory_space<vmem>>, vector<128x8xf32>
    %cst_24 = arith.constant dense<0.000000e+00> : vector<8x8xf32>
    %36 = tpu.matmul %34, %35, %cst_24 {dimension_numbers = #tpu.dot_dimension_numbers<[1], [0], [0], [1], [0, 0, 1, 1], [], []>} : vector<8x128xf32>, vector<128x8xf32>, vector<8x8xf32> -> vector<8x8xf32>
    %c0_25 = arith.constant 0 : index
    %c0_26 = arith.constant 0 : index
    %37 = vector.load %arg9[%c0_25, %c0_26] : memref<4x8xf32, #tpu.memory_space<vmem>>, vector<4x8xf32>
    %cst_27 = arith.constant dense<0.000000e+00> : vector<8x8xf32>
    %38 = tpu.matmul %24, %37, %cst_27 {dimension_numbers = #tpu.dot_dimension_numbers<[1], [0], [0], [1], [0, 0, 1, 1], [], []>} : vector<8x4xf32>, vector<4x8xf32>, vector<8x8xf32> -> vector<8x8xf32>
    %39 = arith.addf %36, %38 : vector<8x8xf32>
    %c0_28 = arith.constant 0 : index
    %c0_29 = arith.constant 0 : index
    %40 = vector.load %arg10[%c0_28, %c0_29] : memref<8x8xf32, #tpu.memory_space<vmem>>, vector<8x8xf32>
    tpu.vector_store %arg10[%c0_28, %c0_29], %39 {strides = array<i32>} : memref<8x8xf32, #tpu.memory_space<vmem>>, vector<8x8xf32>,
    return
  }
}

</mosaic_0001>

<llo_original>
// kernel: tpu_custom_call.1
$region0: #{tpu_custom_call.1}
  #allocation0 [shape = 'u32[]', space=smem, size = 0x4, offset = 0x4, fixed_abs, tag = 'smem constant byte address 0x4 - core index']
  #allocation1 [shape = 'u32[144,128]{1,0:T(1,128)}', space=vmem, size = 0x12000, scoped, tag = 'internal scratch']
  %s0 = inlined_call_operand.vmem [shape: f32[8,32], index: 0, kind: input, shape index: {}]
  %s1 = inlined_call_operand.hbm [shape: f32[32,160], index: 1, kind: input, shape index: {}]
  %s2 = inlined_call_operand.vmem [shape: f32[1,160], index: 2, kind: input, shape index: {}]
  %s3 = inlined_call_operand.vmem [shape: f32[32,4], index: 3, kind: input, shape index: {}]
  %s4 = inlined_call_operand.vmem [shape: f32[1,4], index: 4, kind: input, shape index: {}]
  %s5 = inlined_call_operand.vmem [shape: f32[128,128], index: 5, kind: input, shape index: {}]
  %s6 = inlined_call_operand.vmem [shape: f32[1,128], index: 6, kind: input, shape index: {}]
  %s7 = inlined_call_operand.vmem [shape: f32[4,128], index: 7, kind: input, shape index: {}]
  %s8 = inlined_call_operand.vmem [shape: f32[128,8], index: 8, kind: input, shape index: {}]
  %s9 = inlined_call_operand.vmem [shape: f32[4,8], index: 9, kind: input, shape index: {}]
  %s10 = inlined_call_operand.hbm [shape: f32[8,8], index: 10, kind: output, shape index: {}]
  %s11 = sld [smem:[#allocation0]]
  $region54: #{tpu_custom_call.1} parent=0
    _
  %s13 = ssub.s32 1, %s11
  %s14 = scalar_select 0, %s13, %s11
  $region1: #{tpu_custom_call.1} parent=0
    #allocation2 [shape = 'u8[32768]{0}', space=vmem, size = 0x8000, scoped, tag = 'input window, operand 1, single buffered']
    #allocation3 [shape = 's32[1]{0}', space=sflag, size = 0x4, scoped, tag = 'scoped memory for tpu_custom_call.1']
    #allocation4 [shape = 's32[1]{0}', space=sflag, size = 0x4, scoped, tag = 'scoped memory for tpu_custom_call.1']
    #allocation5 [shape = 'u8[4096]{0}', space=vmem, size = 0x1000, scoped, tag = 'output window, operand 0, single buffered']
    %15 = vsyncpa [#allocation3], 0
    %16 = vsyncpa [#allocation4], 0
    // Predicated region
    $region2: #{tpu_custom_call.1} parent=1 // pred_check
      _
    $region3: #{tpu_custom_call.1} parent=1 // pred_check_branch
      %18 = sbr.rel (0) target = $region5
    $region4: #{tpu_custom_call.1} parent=1 // pred_region
      _
    $region5: #{tpu_custom_call.1} parent=1 // pred_fallthru
      _
    // Predicated region
    $region6: #{tpu_custom_call.1} parent=1 // pred_check
      _
    $region7: #{tpu_custom_call.1} parent=1 // pred_check_branch
      %20 = sbr.rel (0) target = $region9
    $region8: #{tpu_custom_call.1} parent=1 // pred_region
      %s22 = ssub.s32 1024, 1024
      %23 = vsyncadd [#allocation3], %s22
      %s24 = sshll.u32 [#allocation2], 4
      %s25 = int_to_ptr.vmem [resolvable:$true] %s24
      %30 = dma.hbm_to_vmem [thread:$0]  %s1, 1024, %s25, [#allocation3], 256, 256, 16
    $region9: #{tpu_custom_call.1} parent=1 // pred_fallthru
      _
    // Predicated region
    $region10: #{tpu_custom_call.1} parent=1 // pred_check
      _
    $region11: #{tpu_custom_call.1} parent=1 // pred_check_branch
      %32 = sbr.rel (0) target = $region13
    $region12: #{tpu_custom_call.1} parent=1 // pred_region
      _
    $region13: #{tpu_custom_call.1} parent=1 // pred_fallthru
      _
    // Predicated region
    $region14: #{tpu_custom_call.1} parent=1 // pred_check
      _
    $region15: #{tpu_custom_call.1} parent=1 // pred_check_branch
      %34 = sbr.rel (0) target = $region17
    $region16: #{tpu_custom_call.1} parent=1 // pred_region
      _
    $region17: #{tpu_custom_call.1} parent=1 // pred_fallthru
      _
    // Predicated region
    $region18: #{tpu_custom_call.1} parent=1 // pred_check
      _
    $region19: #{tpu_custom_call.1} parent=1 // pred_check_branch
      %36 = sbr.rel (0) target = $region21
    $region20: #{tpu_custom_call.1} parent=1 // pred_region
      _
    $region21: #{tpu_custom_call.1} parent=1 // pred_fallthru
      _
    // Predicated region
    $region22: #{tpu_custom_call.1} parent=1 // pred_check
      _
    $region23: #{tpu_custom_call.1} parent=1 // pred_check_branch
      %38 = sbr.rel (0) target = $region25
    $region24: #{tpu_custom_call.1} parent=1 // pred_region
      _
    $region25: #{tpu_custom_call.1} parent=1 // pred_fallthru
      _
    // Predicated region
    $region26: #{tpu_custom_call.1} parent=1 // pred_check
      _
    $region27: #{tpu_custom_call.1} parent=1 // pred_check_branch
      %40 = sbr.rel (0) target = $region29
    $region28: #{tpu_custom_call.1} parent=1 // pred_region
      _
    $region29: #{tpu_custom_call.1} parent=1 // pred_fallthru
      _
    // Predicated region
    $region30: #{tpu_custom_call.1} parent=1 // pred_check
      _
    $region31: #{tpu_custom_call.1} parent=1 // pred_check_branch
      %42 = sbr.rel (0) target = $region33
    $region32: #{tpu_custom_call.1} parent=1 // pred_region
      _
    $region33: #{tpu_custom_call.1} parent=1 // pred_fallthru
      _
    // Predicated region
    $region34: #{tpu_custom_call.1} parent=1 // pred_check
      _
    $region35: #{tpu_custom_call.1} parent=1 // pred_check_branch
      %44 = sbr.rel (0) target = $region37
    $region36: #{tpu_custom_call.1} parent=1 // pred_region
      _
    $region37: #{tpu_custom_call.1} parent=1 // pred_fallthru
      _
    // Predicated region
    $region38: #{tpu_custom_call.1} parent=1 // pred_check
      _
    $region39: #{tpu_custom_call.1} parent=1 // pred_check_branch
      %46 = sbr.rel (0) target = $region41
    $region40: #{tpu_custom_call.1} parent=1 // pred_region
      _
    $region41: #{tpu_custom_call.1} parent=1 // pred_fallthru
      _
    // Predicated region
    $region42: #{tpu_custom_call.1} parent=1 // pred_check
      _
    $region43: #{tpu_custom_call.1} parent=1 // pred_check_branch
      %48 = sbr.rel (0) target = $region45
    $region44: #{tpu_custom_call.1} parent=1 // pred_region
      %49 = dma.done [#allocation3], 1024
    $region45: #{tpu_custom_call.1} parent=1 // pred_fallthru
      _
    %v50 = vld [vmem:[%s0] sm:$0xff]
    %v51 = vld [vmem:[#allocation2] sm:$0xff]
    %v52 = vld [vmem:[#allocation2 + $0x8] sm:$0xff]
    %v53 = vld [vmem:[#allocation2 + $0x10] sm:$0xff]
    %v54 = vld [vmem:[#allocation2 + $0x18] sm:$0xff]
    %v55 = vld [vmem:[#allocation2 + $0x20] sm:$0xff]
    %v56 = vld [vmem:[#allocation2 + $0x28] sm:$0xff]
    %v57 = vld [vmem:[#allocation2 + $0x30] sm:$0xff]
    %v58 = vld [vmem:[#allocation2 + $0x38] sm:$0xff]
    %v59 = vld [vmem:[%s2] sm:$0x3]
    %v61 = vlaneseq
    %v62 = vshrl.u32 %v61, 7
    %v63 = vsub.s32 0, %v62
    %v64 = vrot.slane %v59, %v63
    %v65 = vlaneseq
    %v66 = vshrl.u32 %v65, 7
    %v67 = vsub.s32 1, %v66
    %v68 = vrot.slane %v59, %v67
    %vm71 = vcmask 261120
    %v73 = vsel %vm71, %v50, 0
    %75 = vmatprep.subr.mxu0 %v52
    %76 = vmatpush1.msra.mxu0 %v51
    %77 = vmatprep.subr.mxu0 %v54
    %78 = vmatpush1.msra.mxu0 %v53
    %79 = vmatprep.subr.mxu0 %v56
    %80 = vmatpush1.msra.mxu0 %v55
    %81 = vmatprep.subr.mxu0 %v58
    %82 = vmatpush1.msra.mxu0 %v57
    %83 = vmatprep.subr.mxu0 0.0
    %84 = vmatpush1.msra.mxu0 0.0
    %85 = vmatprep.subr.mxu0 0.0
    %86 = vmatpush1.msra.mxu0 0.0
    %87 = vmatprep.subr.mxu0 0.0
    %88 = vmatpush1.msra.mxu0 0.0
    %89 = vmatprep.subr.mxu0 0.0
    %90 = vmatpush1.msra.mxu0 0.0
    %91 = vmatprep.subr.mxu0 0.0
    %92 = vmatpush1.msra.mxu0 0.0
    %93 = vmatprep.subr.mxu0 0.0
    %94 = vmatpush1.msra.mxu0 0.0
    %95 = vmatprep.subr.mxu0 0.0
    %96 = vmatpush1.msra.mxu0 0.0
    %97 = vmatprep.subr.mxu0 0.0
    %98 = vmatpush1.msra.mxu0 0.0
    %99 = vmatprep.subr.mxu0 0.0
    %100 = vmatpush1.msra.mxu0 0.0
    %101 = vmatprep.subr.mxu0 0.0
    %102 = vmatpush1.msra.mxu0 0.0
    %103 = vmatprep.subr.mxu0 0.0
    %104 = vmatpush1.msra.mxu0 0.0
    %105 = vmatprep.subr.mxu0 0.0
    %106 = vmatpush1.msra.mxu0 0.0
    %107 = vmatprep.subr.mxu0 0.0
    %108 = vmatpush1.msra.mxu0 0.0
    %109 = vmatprep.subr.mxu0 0.0
    %110 = vmatpush1.msra.mxu0 0.0
    %111 = vmatprep.subr.mxu0 0.0
    %112 = vmatpush1.msra.mxu0 0.0
    %113 = vmatprep.subr.mxu0 0.0
    %114 = vmatpush1.msra.mxu0 0.0
    %115 = vmatprep.subr.mxu0 0.0
    %116 = vmatpush1.msra.mxu0 0.0
    %117 = vmatprep.subr.mxu0 0.0
    %118 = vmatpush1.msra.mxu0 0.0
    %119 = vmatprep.subr.mxu0 0.0
    %120 = vmatpush1.msra.mxu0 0.0
    %121 = vmatprep.subr.mxu0 0.0
    %122 = vmatpush1.msra.mxu0 0.0
    %123 = vmatprep.subr.mxu0 0.0
    %124 = vmatpush1.msra.mxu0 0.0
    %125 = vmatprep.subr.mxu0 0.0
    %126 = vmatpush1.msra.mxu0 0.0
    %127 = vmatprep.subr.mxu0 0.0
    %128 = vmatpush1.msra.mxu0 0.0
    %129 = vmatprep.subr.mxu0 0.0
    %130 = vmatpush1.msra.mxu0 0.0
    %131 = vmatprep.subr.mxu0 0.0
    %132 = vmatpush1.msra.mxu0 0.0
    %133 = vmatprep.subr.mxu0 0.0
    %134 = vmatpush1.msra.mxu0 0.0
    %135 = vmatprep.subr.mxu0 0.0
    %136 = vmatpush1.msra.mxu0 0.0
    %137 = vmatprep.subr.mxu0 0.0
    %138 = vmatpush1.msra.mxu0 0.0
    %139 = vmatprep.mubr.f32.mxu0 0.0
    %140 = vmatmul.mubr.f32.gmra.mrb[0].mxu0 %v73
    %v141 = vpop.f32.mrb[0].mxu0
    %v142 = vadd.f32 %v64, %v141
    %v143 = vpop.f32.mrb[0].mxu0
    %v144 = vadd.f32 %v68, %v143
    %145 = vdwg.mxu0
    %v146 = vmax.f32 %v142, 0.0
    %v147 = vmax.f32 %v144, 0.0
    %v148 = vld [vmem:[%s3] sm:$0xff]
    %v149 = vld [vmem:[%s3 + $0x8] sm:$0xff]
    %v150 = vld [vmem:[%s3 + $0x10] sm:$0xff]
    %v151 = vld [vmem:[%s3 + $0x18] sm:$0xff]
    %v152 = vld [vmem:[%s4] sm:$0x1]
    %v154 = vlaneseq
    %v155 = vshrl.u32 %v154, 7
    %v156 = vsub.s32 0, %v155
    %v157 = vrot.slane %v152, %v156
    %v160 = vsel %vm71, %v147, 0
    %162 = vmatprep.subr.mxu0 0.0
    %163 = vmatpush1.msra.mxu0 %v148
    %164 = vmatprep.subr.mxu0 0.0
    %165 = vmatpush1.msra.mxu0 %v149
    %166 = vmatprep.subr.mxu0 0.0
    %167 = vmatpush1.msra.mxu0 %v150
    %168 = vmatprep.subr.mxu0 0.0
    %169 = vmatpush1.msra.mxu0 %v151
    %170 = vmatprep.subr.mxu0 0.0
    %171 = vmatpush1.msra.mxu0 0.0
    %172 = vmatprep.subr.mxu0 0.0
    %173 = vmatpush1.msra.mxu0 0.0
    %174 = vmatprep.subr.mxu0 0.0
    %175 = vmatpush1.msra.mxu0 0.0
    %176 = vmatprep.subr.mxu0 0.0
    %177 = vmatpush1.msra.mxu0 0.0
    %178 = vmatprep.subr.mxu0 0.0
    %179 = vmatpush1.msra.mxu0 0.0
    %180 = vmatprep.subr.mxu0 0.0
    %181 = vmatpush1.msra.mxu0 0.0
    %182 = vmatprep.subr.mxu0 0.0
    %183 = vmatpush1.msra.mxu0 0.0
    %184 = vmatprep.subr.mxu0 0.0
    %185 = vmatpush1.msra.mxu0 0.0
    %186 = vmatprep.subr.mxu0 0.0
    %187 = vmatpush1.msra.mxu0 0.0
    %188 = vmatprep.subr.mxu0 0.0
    %189 = vmatpush1.msra.mxu0 0.0
    %190 = vmatprep.subr.mxu0 0.0
    %191 = vmatpush1.msra.mxu0 0.0
    %192 = vmatprep.subr.mxu0 0.0
    %193 = vmatpush1.msra.mxu0 0.0
    %194 = vmatprep.subr.mxu0 0.0
    %195 = vmatpush1.msra.mxu0 0.0
    %196 = vmatprep.subr.mxu0 0.0
    %197 = vmatpush1.msra.mxu0 0.0
    %198 = vmatprep.subr.mxu0 0.0
    %199 = vmatpush1.msra.mxu0 0.0
    %200 = vmatprep.subr.mxu0 0.0
    %201 = vmatpush1.msra.mxu0 0.0
    %202 = vmatprep.subr.mxu0 0.0
    %203 = vmatpush1.msra.mxu0 0.0
    %204 = vmatprep.subr.mxu0 0.0
    %205 = vmatpush1.msra.mxu0 0.0
    %206 = vmatprep.subr.mxu0 0.0
    %207 = vmatpush1.msra.mxu0 0.0
    %208 = vmatprep.subr.mxu0 0.0
    %209 = vmatpush1.msra.mxu0 0.0
    %210 = vmatprep.subr.mxu0 0.0
    %211 = vmatpush1.msra.mxu0 0.0
    %212 = vmatprep.subr.mxu0 0.0
    %213 = vmatpush1.msra.mxu0 0.0
    %214 = vmatprep.subr.mxu0 0.0
    %215 = vmatpush1.msra.mxu0 0.0
    %216 = vmatprep.subr.mxu0 0.0
    %217 = vmatpush1.msra.mxu0 0.0
    %218 = vmatprep.subr.mxu0 0.0
    %219 = vmatpush1.msra.mxu0 0.0
    %220 = vmatprep.subr.mxu0 0.0
    %221 = vmatpush1.msra.mxu0 0.0
    %222 = vmatprep.subr.mxu0 0.0
    %223 = vmatpush1.msra.mxu0 0.0
    %224 = vmatprep.subr.mxu0 0.0
    %225 = vmatpush1.msra.mxu0 0.0
    %226 = vmatprep.mubr.f32.mxu0 0.0
    %227 = vmatmul.mubr.f32.gmra.mrb[0].mxu0 %v160
    %v228 = vpop.f32.mrb[0].mxu0
    %v229 = vadd.f32 %v157, %v228
    %v230 = vpop.f32.mrb[0].mxu0
    %231 = vdwg.mxu0
    %vm232 = vcmask 31744
    %v233 = vsel %vm232, %v229, -inf
    %234 = vmax.xlane.f32.xlu0 %v233
    %v235 = vpop.xlane.xlu0 %234
    %v236 = vsub.f32 %v229, %v235
    %v237 = vmul.f32 %v236, 1.442695
    %v238 = vpow.pop %v237
    %v239 = vsel %vm232, %v238, 0.0
    %240 = vadd.xlane.f32.xlu0 %v239
    %v241 = vpop.xlane.xlu0 %240
    %v242 = vrcp.pop %v241
    %v243 = vmul.f32 %v238, %v242
    %v244 = vld [vmem:[%s5] sm:$0xff]
    %v245 = vld [vmem:[%s5 + $0x8] sm:$0xff]
    %v246 = vld [vmem:[%s5 + $0x10] sm:$0xff]
    %v247 = vld [vmem:[%s5 + $0x18] sm:$0xff]
    %v248 = vld [vmem:[%s5 + $0x20] sm:$0xff]
    %v249 = vld [vmem:[%s5 + $0x28] sm:$0xff]
    %v250 = vld [vmem:[%s5 + $0x30] sm:$0xff]
    %v251 = vld [vmem:[%s5 + $0x38] sm:$0xff]
    %v252 = vld [vmem:[%s5 + $0x40] sm:$0xff]
    %v253 = vld [vmem:[%s5 + $0x48] sm:$0xff]
    %v254 = vld [vmem:[%s5 + $0x50] sm:$0xff]
    %v255 = vld [vmem:[%s5 + $0x58] sm:$0xff]
    %v256 = vld [vmem:[%s5 + $0x60] sm:$0xff]
    %v257 = vld [vmem:[%s5 + $0x68] sm:$0xff]
    %v258 = vld [vmem:[%s5 + $0x70] sm:$0xff]
    %v259 = vld [vmem:[%s5 + $0x78] sm:$0xff]
    %v260 = vld [vmem:[%s6] sm:$0x1]
    %v262 = vlaneseq
    %v263 = vshrl.u32 %v262, 7
    %v264 = vsub.s32 0, %v263
    %v265 = vrot.slane %v260, %v264
    %267 = vmatprep.subr.mxu0 0.0
    %268 = vmatpush1.msra.mxu0 %v244
    %269 = vmatprep.subr.mxu0 0.0
    %270 = vmatpush1.msra.mxu0 %v245
    %271 = vmatprep.subr.mxu0 0.0
    %272 = vmatpush1.msra.mxu0 %v246
    %273 = vmatprep.subr.mxu0 0.0
    %274 = vmatpush1.msra.mxu0 %v247
    %275 = vmatprep.subr.mxu0 0.0
    %276 = vmatpush1.msra.mxu0 %v248
    %277 = vmatprep.subr.mxu0 0.0
    %278 = vmatpush1.msra.mxu0 %v249
    %279 = vmatprep.subr.mxu0 0.0
    %280 = vmatpush1.msra.mxu0 %v250
    %281 = vmatprep.subr.mxu0 0.0
    %282 = vmatpush1.msra.mxu0 %v251
    %283 = vmatprep.subr.mxu0 0.0
    %284 = vmatpush1.msra.mxu0 %v252
    %285 = vmatprep.subr.mxu0 0.0
    %286 = vmatpush1.msra.mxu0 %v253
    %287 = vmatprep.subr.mxu0 0.0
    %288 = vmatpush1.msra.mxu0 %v254
    %289 = vmatprep.subr.mxu0 0.0
    %290 = vmatpush1.msra.mxu0 %v255
    %291 = vmatprep.subr.mxu0 0.0
    %292 = vmatpush1.msra.mxu0 %v256
    %293 = vmatprep.subr.mxu0 0.0
    %294 = vmatpush1.msra.mxu0 %v257
    %295 = vmatprep.subr.mxu0 0.0
    %296 = vmatpush1.msra.mxu0 %v258
    %297 = vmatprep.subr.mxu0 0.0
    %298 = vmatpush1.msra.mxu0 %v259
    %299 = vmatprep.subr.mxu0 0.0
    %300 = vmatpush1.msra.mxu0 0.0
    %301 = vmatprep.subr.mxu0 0.0
    %302 = vmatpush1.msra.mxu0 0.0
    %303 = vmatprep.subr.mxu0 0.0
    %304 = vmatpush1.msra.mxu0 0.0
    %305 = vmatprep.subr.mxu0 0.0
    %306 = vmatpush1.msra.mxu0 0.0
    %307 = vmatprep.subr.mxu0 0.0
    %308 = vmatpush1.msra.mxu0 0.0
    %309 = vmatprep.subr.mxu0 0.0
    %310 = vmatpush1.msra.mxu0 0.0
    %311 = vmatprep.subr.mxu0 0.0
    %312 = vmatpush1.msra.mxu0 0.0
    %313 = vmatprep.subr.mxu0 0.0
    %314 = vmatpush1.msra.mxu0 0.0
    %315 = vmatprep.subr.mxu0 0.0
    %316 = vmatpush1.msra.mxu0 0.0
    %317 = vmatprep.subr.mxu0 0.0
    %318 = vmatpush1.msra.mxu0 0.0
    %319 = vmatprep.subr.mxu0 0.0
    %320 = vmatpush1.msra.mxu0 0.0
    %321 = vmatprep.subr.mxu0 0.0
    %322 = vmatpush1.msra.mxu0 0.0
    %323 = vmatprep.subr.mxu0 0.0
    %324 = vmatpush1.msra.mxu0 0.0
    %325 = vmatprep.subr.mxu0 0.0
    %326 = vmatpush1.msra.mxu0 0.0
    %327 = vmatprep.subr.mxu0 0.0
    %328 = vmatpush1.msra.mxu0 0.0
    %329 = vmatprep.subr.mxu0 0.0
    %330 = vmatpush1.msra.mxu0 0.0
    %331 = vmatprep.mubr.f32.mxu0 0.0
    %332 = vmatmul.mubr.f32.gmra.mrb[0].mxu0 %v146
    %v333 = vpop.f32.mrb[0].mxu0
    %v334 = vadd.f32 %v265, %v333
    %v335 = vpop.f32.mrb[0].mxu0
    %336 = vdwg.mxu0
    %v337 = vmax.f32 %v334, 0.0
    %v338 = vld [vmem:[%s7] sm:$0xf]
    %v340 = vsel %vm232, %v243, 0
    %vm342 = vcmask 1043456
    %v344 = vsel %vm342, %v338, 0
    %346 = vmatprep.subr.mxu0 0.0
    %347 = vmatpush1.msra.mxu0 %v344
    %348 = vmatprep.subr.mxu0 0.0
    %349 = vmatpush1.msra.mxu0 0.0
    %350 = vmatprep.subr.mxu0 0.0
    %351 = vmatpush1.msra.mxu0 0.0
    %352 = vmatprep.subr.mxu0 0.0
    %353 = vmatpush1.msra.mxu0 0.0
    %354 = vmatprep.subr.mxu0 0.0
    %355 = vmatpush1.msra.mxu0 0.0
    %356 = vmatprep.subr.mxu0 0.0
    %357 = vmatpush1.msra.mxu0 0.0
    %358 = vmatprep.subr.mxu0 0.0
    %359 = vmatpush1.msra.mxu0 0.0
    %360 = vmatprep.subr.mxu0 0.0
    %361 = vmatpush1.msra.mxu0 0.0
    %362 = vmatprep.subr.mxu0 0.0
    %363 = vmatpush1.msra.mxu0 0.0
    %364 = vmatprep.subr.mxu0 0.0
    %365 = vmatpush1.msra.mxu0 0.0
    %366 = vmatprep.subr.mxu0 0.0
    %367 = vmatpush1.msra.mxu0 0.0
    %368 = vmatprep.subr.mxu0 0.0
    %369 = vmatpush1.msra.mxu0 0.0
    %370 = vmatprep.subr.mxu0 0.0
    %371 = vmatpush1.msra.mxu0 0.0
    %372 = vmatprep.subr.mxu0 0.0
    %373 = vmatpush1.msra.mxu0 0.0
    %374 = vmatprep.subr.mxu0 0.0
    %375 = vmatpush1.msra.mxu0 0.0
    %376 = vmatprep.subr.mxu0 0.0
    %377 = vmatpush1.msra.mxu0 0.0
    %378 = vmatprep.subr.mxu0 0.0
    %379 = vmatpush1.msra.mxu0 0.0
    %380 = vmatprep.subr.mxu0 0.0
    %381 = vmatpush1.msra.mxu0 0.0
    %382 = vmatprep.subr.mxu0 0.0
    %383 = vmatpush1.msra.mxu0 0.0
    %384 = vmatprep.subr.mxu0 0.0
    %385 = vmatpush1.msra.mxu0 0.0
    %386 = vmatprep.subr.mxu0 0.0
    %387 = vmatpush1.msra.mxu0 0.0
    %388 = vmatprep.subr.mxu0 0.0
    %389 = vmatpush1.msra.mxu0 0.0
    %390 = vmatprep.subr.mxu0 0.0
    %391 = vmatpush1.msra.mxu0 0.0
    %392 = vmatprep.subr.mxu0 0.0
    %393 = vmatpush1.msra.mxu0 0.0
    %394 = vmatprep.subr.mxu0 0.0
    %395 = vmatpush1.msra.mxu0 0.0
    %396 = vmatprep.subr.mxu0 0.0
    %397 = vmatpush1.msra.mxu0 0.0
    %398 = vmatprep.subr.mxu0 0.0
    %399 = vmatpush1.msra.mxu0 0.0
    %400 = vmatprep.subr.mxu0 0.0
    %401 = vmatpush1.msra.mxu0 0.0
    %402 = vmatprep.subr.mxu0 0.0
    %403 = vmatpush1.msra.mxu0 0.0
    %404 = vmatprep.subr.mxu0 0.0
    %405 = vmatpush1.msra.mxu0 0.0
    %406 = vmatprep.subr.mxu0 0.0
    %407 = vmatpush1.msra.mxu0 0.0
    %408 = vmatprep.subr.mxu0 0.0
    %409 = vmatpush1.msra.mxu0 0.0
    %410 = vmatprep.mubr.f32.mxu0 0.0
    %411 = vmatmul.mubr.f32.gmra.mrb[0].mxu0 %v340
    %v412 = vpop.f32.mrb[0].mxu0
    %v413 = vadd.f32 0.0, %v412
    %v414 = vpop.f32.mrb[0].mxu0
    %415 = vdwg.mxu0
    %v416 = vmul.f32 %v337, %v413
    %v417 = vld [vmem:[%s8] sm:$0xff]
    %v418 = vld [vmem:[%s8 + $0x8] sm:$0xff]
    %v419 = vld [vmem:[%s8 + $0x10] sm:$0xff]
    %v420 = vld [vmem:[%s8 + $0x18] sm:$0xff]
    %v421 = vld [vmem:[%s8 + $0x20] sm:$0xff]
    %v422 = vld [vmem:[%s8 + $0x28] sm:$0xff]
    %v423 = vld [vmem:[%s8 + $0x30] sm:$0xff]
    %v424 = vld [vmem:[%s8 + $0x38] sm:$0xff]
    %v425 = vld [vmem:[%s8 + $0x40] sm:$0xff]
    %v426 = vld [vmem:[%s8 + $0x48] sm:$0xff]
    %v427 = vld [vmem:[%s8 + $0x50] sm:$0xff]
    %v428 = vld [vmem:[%s8 + $0x58] sm:$0xff]
    %v429 = vld [vmem:[%s8 + $0x60] sm:$0xff]
    %v430 = vld [vmem:[%s8 + $0x68] sm:$0xff]
    %v431 = vld [vmem:[%s8 + $0x70] sm:$0xff]
    %v432 = vld [vmem:[%s8 + $0x78] sm:$0xff]
    %v433 = vld [vmem:[%s9] sm:$0xf]
    %v435 = vsel %vm342, %v433, 0
    %437 = vmatprep.subr.mxu0 0.0
    %438 = vmatpush1.msra.mxu0 %v435
    %439 = vmatprep.subr.mxu0 0.0
    %440 = vmatpush1.msra.mxu0 0.0
    %441 = vmatprep.subr.mxu0 0.0
    %442 = vmatpush1.msra.mxu0 0.0
    %443 = vmatprep.subr.mxu0 0.0
    %444 = vmatpush1.msra.mxu0 0.0
    %445 = vmatprep.subr.mxu0 0.0
    %446 = vmatpush1.msra.mxu0 0.0
    %447 = vmatprep.subr.mxu0 0.0
    %448 = vmatpush1.msra.mxu0 0.0
    %449 = vmatprep.subr.mxu0 0.0
    %450 = vmatpush1.msra.mxu0 0.0
    %451 = vmatprep.subr.mxu0 0.0
    %452 = vmatpush1.msra.mxu0 0.0
    %453 = vmatprep.subr.mxu0 0.0
    %454 = vmatpush1.msra.mxu0 0.0
    %455 = vmatprep.subr.mxu0 0.0
    %456 = vmatpush1.msra.mxu0 0.0
    %457 = vmatprep.subr.mxu0 0.0
    %458 = vmatpush1.msra.mxu0 0.0
    %459 = vmatprep.subr.mxu0 0.0
    %460 = vmatpush1.msra.mxu0 0.0
    %461 = vmatprep.subr.mxu0 0.0
    %462 = vmatpush1.msra.mxu0 0.0
    %463 = vmatprep.subr.mxu0 0.0
    %464 = vmatpush1.msra.mxu0 0.0
    %465 = vmatprep.subr.mxu0 0.0
    %466 = vmatpush1.msra.mxu0 0.0
    %467 = vmatprep.subr.mxu0 0.0
    %468 = vmatpush1.msra.mxu0 0.0
    %469 = vmatprep.subr.mxu0 0.0
    %470 = vmatpush1.msra.mxu0 0.0
    %471 = vmatprep.subr.mxu0 0.0
    %472 = vmatpush1.msra.mxu0 0.0
    %473 = vmatprep.subr.mxu0 0.0
    %474 = vmatpush1.msra.mxu0 0.0
    %475 = vmatprep.subr.mxu0 0.0
    %476 = vmatpush1.msra.mxu0 0.0
    %477 = vmatprep.subr.mxu0 0.0
    %478 = vmatpush1.msra.mxu0 0.0
    %479 = vmatprep.subr.mxu0 0.0
    %480 = vmatpush1.msra.mxu0 0.0
    %481 = vmatprep.subr.mxu0 0.0
    %482 = vmatpush1.msra.mxu0 0.0
    %483 = vmatprep.subr.mxu0 0.0
    %484 = vmatpush1.msra.mxu0 0.0
    %485 = vmatprep.subr.mxu0 0.0
    %486 = vmatpush1.msra.mxu0 0.0
    %487 = vmatprep.subr.mxu0 0.0
    %488 = vmatpush1.msra.mxu0 0.0
    %489 = vmatprep.subr.mxu0 0.0
    %490 = vmatpush1.msra.mxu0 0.0
    %491 = vmatprep.subr.mxu0 0.0
    %492 = vmatpush1.msra.mxu0 0.0
    %493 = vmatprep.subr.mxu0 0.0
    %494 = vmatpush1.msra.mxu0 0.0
    %495 = vmatprep.subr.mxu0 0.0
    %496 = vmatpush1.msra.mxu0 0.0
    %497 = vmatprep.subr.mxu0 0.0
    %498 = vmatpush1.msra.mxu0 0.0
    %499 = vmatprep.subr.mxu0 0.0
    %500 = vmatpush1.msra.mxu0 0.0
    %501 = vmatprep.mubr.f32.mxu0 0.0
    %502 = vmatmul.mubr.f32.gmra.mrb[0].mxu0 %v340
    %v503 = vpop.f32.mrb[0].mxu0
    %v504 = vadd.f32 0.0, %v503
    %v505 = vpop.f32.mrb[0].mxu0
    %506 = vdwg.mxu0
    %507 = vmatprep.subr.mxu0 0.0
    %508 = vmatpush1.msra.mxu0 %v417
    %509 = vmatprep.subr.mxu0 0.0
    %510 = vmatpush1.msra.mxu0 %v418
    %511 = vmatprep.subr.mxu0 0.0
    %512 = vmatpush1.msra.mxu0 %v419
    %513 = vmatprep.subr.mxu0 0.0
    %514 = vmatpush1.msra.mxu0 %v420
    %515 = vmatprep.subr.mxu0 0.0
    %516 = vmatpush1.msra.mxu0 %v421
    %517 = vmatprep.subr.mxu0 0.0
    %518 = vmatpush1.msra.mxu0 %v422
    %519 = vmatprep.subr.mxu0 0.0
    %520 = vmatpush1.msra.mxu0 %v423
    %521 = vmatprep.subr.mxu0 0.0
    %522 = vmatpush1.msra.mxu0 %v424
    %523 = vmatprep.subr.mxu0 0.0
    %524 = vmatpush1.msra.mxu0 %v425
    %525 = vmatprep.subr.mxu0 0.0
    %526 = vmatpush1.msra.mxu0 %v426
    %527 = vmatprep.subr.mxu0 0.0
    %528 = vmatpush1.msra.mxu0 %v427
    %529 = vmatprep.subr.mxu0 0.0
    %530 = vmatpush1.msra.mxu0 %v428
    %531 = vmatprep.subr.mxu0 0.0
    %532 = vmatpush1.msra.mxu0 %v429
    %533 = vmatprep.subr.mxu0 0.0
    %534 = vmatpush1.msra.mxu0 %v430
    %535 = vmatprep.subr.mxu0 0.0
    %536 = vmatpush1.msra.mxu0 %v431
    %537 = vmatprep.subr.mxu0 0.0
    %538 = vmatpush1.msra.mxu0 %v432
    %539 = vmatprep.subr.mxu0 0.0
    %540 = vmatpush1.msra.mxu0 0.0
    %541 = vmatprep.subr.mxu0 0.0
    %542 = vmatpush1.msra.mxu0 0.0
    %543 = vmatprep.subr.mxu0 0.0
    %544 = vmatpush1.msra.mxu0 0.0
    %545 = vmatprep.subr.mxu0 0.0
    %546 = vmatpush1.msra.mxu0 0.0
    %547 = vmatprep.subr.mxu0 0.0
    %548 = vmatpush1.msra.mxu0 0.0
    %549 = vmatprep.subr.mxu0 0.0
    %550 = vmatpush1.msra.mxu0 0.0
    %551 = vmatprep.subr.mxu0 0.0
    %552 = vmatpush1.msra.mxu0 0.0
    %553 = vmatprep.subr.mxu0 0.0
    %554 = vmatpush1.msra.mxu0 0.0
    %555 = vmatprep.subr.mxu0 0.0
    %556 = vmatpush1.msra.mxu0 0.0
    %557 = vmatprep.subr.mxu0 0.0
    %558 = vmatpush1.msra.mxu0 0.0
    %559 = vmatprep.subr.mxu0 0.0
    %560 = vmatpush1.msra.mxu0 0.0
    %561 = vmatprep.subr.mxu0 0.0
    %562 = vmatpush1.msra.mxu0 0.0
    %563 = vmatprep.subr.mxu0 0.0
    %564 = vmatpush1.msra.mxu0 0.0
    %565 = vmatprep.subr.mxu0 0.0
    %566 = vmatpush1.msra.mxu0 0.0
    %567 = vmatprep.subr.mxu0 0.0
    %568 = vmatpush1.msra.mxu0 0.0
    %569 = vmatprep.subr.mxu0 0.0
    %570 = vmatpush1.msra.mxu0 0.0
    %571 = vmatprep.mubr.f32.mxu0 0.0
    %572 = vmatmul.mubr.f32.gmra.mrb[0].mxu0 %v416
    %v573 = vpop.f32.mrb[0].mxu0
    %v574 = vadd.f32 %v504, %v573
    %v575 = vpop.f32.mrb[0].mxu0
    %576 = vdwg.mxu0
    %vm577 = vcmask 64512
    %578 = vst.msk [vmem:[#allocation5] sm:$0xff] %vm577, %v574
    // Predicated region
    $region46: #{tpu_custom_call.1} parent=1 // pred_check
      _
    $region47: #{tpu_custom_call.1} parent=1 // pred_check_branch
      %580 = sbr.rel (0) target = $region49
    $region48: #{tpu_custom_call.1} parent=1 // pred_region
      %s582 = ssub.s32 128, 128
      %583 = vsyncadd [#allocation4], %s582
      %s585 = sshll.u32 [#allocation5], 4
      %s586 = int_to_ptr.vmem [resolvable:$true] %s585
      %588 = dma.vmem_to_hbm [thread:$0]  %s586, 128, %s10, [#allocation4]
    $region49: #{tpu_custom_call.1} parent=1 // pred_fallthru
      _
    // Predicated region
    $region50: #{tpu_custom_call.1} parent=1 // pred_check
      _
    $region51: #{tpu_custom_call.1} parent=1 // pred_check_branch
      %590 = sbr.rel (0) target = $region53
    $region52: #{tpu_custom_call.1} parent=1 // pred_region
      %591 = dma.done [#allocation4], 128
    $region53: #{tpu_custom_call.1} parent=1 // pred_fallthru
      _
    %592 = vsyncpa [#allocation3], 1
    %593 = vsyncpa [#allocation4], 1

</llo_original>
